<compile_context>
chip_gen: v5e
topology: v5e:2x2
jax: 0.10.0
libtpu: 0.0.40
codegen_flags: <defaults>
</compile_context>

<pallas_src>
import jax
import jax.numpy as jnp
from jax.experimental import pallas as pl
from jax.experimental.pallas import tpu as pltpu

HID1 = 256
HID2 = 64


def _round_up(x, m):
    return ((x + m - 1) // m) * m


def _mlp_kernel(x_ref, w1t_ref, b1_ref, w2_ref, b2_ref, w3_ref, b3_ref, o_ref):
    # x_ref:   (TILE_B, D_in)  f32   (cast to bf16 in-kernel)
    # w1t_ref: (256, D_in)     bf16  (resident across grid steps)
    # b1_ref:  (256, 1)        f32
    # w2_ref:  (64, 256)       bf16  (resident)
    # b2_ref:  (64, 1)         f32
    # w3_ref:  (64, 1)         f32
    # b3_ref:  (1,)            f32   (SMEM scalar)
    # o_ref:   (1, TILE_B)     f32   (lane-dense output row)

    # In-kernel f32 -> bf16 cast (VPU) keeps the HBM x stream at 4 B/elem total.
    x_bf = x_ref[...].astype(jnp.bfloat16)

    # ---- Layer 1 (transposed): h1t = w1t · x^T -> (256, TILE_B), batch on lanes.
    h1t = jax.lax.dot_general(
        w1t_ref[...], x_bf,
        dimension_numbers=(((1,), (1,)), ((), ())),
        preferred_element_type=jnp.float32)
    h1t = jnp.maximum(h1t + b1_ref[...], 0.0)                   # (256, TILE_B) f32

    # ---- Layer 2: natural (64,256) @ (256,TILE_B) — no activation transpose.
    h2t = jnp.dot(w2_ref[...], h1t.astype(jnp.bfloat16),
                  preferred_element_type=jnp.float32)            # (64, TILE_B) f32
    h2t = jnp.maximum(h2t + b2_ref[...], 0.0)

    # Dropout(p=0.2): identity in eval mode.

    # ---- Layer 3: Linear(64, 1) off the MXU: VPU multiply + sublane reduce.
    logits = jnp.sum(h2t * w3_ref[...], axis=0, keepdims=True)   # (1, TILE_B) f32
    o_ref[...] = jax.nn.sigmoid(logits + b3_ref[0])


def binary_classification_forward(x, params, *, tile_b=None, n_cores=2,
                                  max_tile_b=1024):
    """x: [B, D_in] float32. Returns sigmoid probabilities [B, 1] float32."""
    B, d_in = x.shape

    # Adaptive batch tile: aim for ~n_cores even tiles (v7x dual-TC balance),
    # multiple of 128 (lane-aligned output), capped to avoid padding waste.
    if tile_b is None:
        tile_b = min(_round_up(max(pl.cdiv(B, n_cores), 1), 128), max_tile_b)

    num_tiles = pl.cdiv(B, tile_b)
    B_pad = num_tiles * tile_b
    if B_pad != B:
        x = jnp.pad(x, ((0, B_pad - B), (0, 0)))   # stays f32; cast is in-kernel

    w1t, b1 = params["w1t"], params["b1"]        # (256,D_in) bf16, (256,1) f32
    w2, b2 = params["w2"], params["b2"]          # (64,256)   bf16, (64,1)  f32
    w3, b3 = params["w3"], params["b3"]          # (64,1) f32,      (1,)    f32

    flops = 2 * B_pad * (d_in * HID1 + HID1 * HID2 + HID2)
    bytes_accessed = (B_pad * d_in * 4                     # x (f32, read once)
                      + d_in * HID1 * 2 + HID2 * HID1 * 2  # weights (bf16)
                      + (HID1 + HID2 + HID2 + 1) * 4       # biases / w3 (f32)
                      + B_pad * 4)                         # output (f32)
    cost = pl.CostEstimate(flops=flops, transcendentals=B_pad,
                           bytes_accessed=bytes_accessed)

    out_row = pl.pallas_call(
        _mlp_kernel,
        out_shape=jax.ShapeDtypeStruct((1, B_pad), jnp.float32),
        grid=(num_tiles,),
        in_specs=[
            pl.BlockSpec((tile_b, d_in), lambda i: (i, 0)),      # x tile (f32)
            pl.BlockSpec((HID1, d_in), lambda i: (0, 0)),        # w1^T (resident)
            pl.BlockSpec((HID1, 1), lambda i: (0, 0)),           # b1 (resident)
            pl.BlockSpec((HID2, HID1), lambda i: (0, 0)),        # w2 (resident)
            pl.BlockSpec((HID2, 1), lambda i: (0, 0)),           # b2 (resident)
            pl.BlockSpec((HID2, 1), lambda i: (0, 0)),           # w3 (resident)
            pl.BlockSpec(memory_space=pltpu.SMEM),               # b3 scalar
        ],
        out_specs=pl.BlockSpec((1, tile_b), lambda i: (0, i)),   # lane-dense row
        compiler_params=pltpu.CompilerParams(
            dimension_semantics=("parallel",),
            vmem_limit_bytes=32 * 1024 * 1024,
        ),
        cost_estimate=cost,
    )(x, w1t, b1, w2, b2, w3, b3)

    # (1, B_pad) lane-dense slab -> (B, 1), drop batch padding.
    return out_row.reshape(B_pad, 1)[:B]


def init_params(key, d_in):
    """nn.Linear-style init. Matmul weights stored bf16 (MXU); rest f32."""
    k1, k2, k3, k4, k5, k6 = jax.random.split(key, 6)

    def unif(k, shape, fan_in):
        bound = 1.0 / (fan_in ** 0.5)
        return jax.random.uniform(k, shape, jnp.float32, -bound, bound)

    return {
        "w1t": unif(k1, (HID1, d_in), d_in).astype(jnp.bfloat16),  # [out, in]
        "b1": unif(k2, (HID1, 1), d_in),
        "w2": unif(k3, (HID2, HID1), HID1).astype(jnp.bfloat16),   # [out, in]
        "b2": unif(k4, (HID2, 1), HID1),
        "w3": unif(k5, (HID2, 1), HID2),
        "b3": unif(k6, (1,), HID2),
    }


def reference_forward(x, params):
    """Pure-JAX reference with the same bf16/f32 numerics as the kernel."""
    h1 = jnp.dot(x.astype(jnp.bfloat16), params["w1t"].T,
                 preferred_element_type=jnp.float32) + params["b1"].reshape(1, -1)
    h1 = jnp.maximum(h1, 0.0)
    h2 = jnp.dot(h1.astype(jnp.bfloat16), params["w2"].T,
                 preferred_element_type=jnp.float32) + params["b2"].reshape(1, -1)
    h2 = jnp.maximum(h2, 0.0)
    logits = h2 @ params["w3"] + params["b3"].reshape(1, 1)
    return jax.nn.sigmoid(logits)


if __name__ == "__main__":
    key = jax.random.PRNGKey(0)
    k_x, k_p = jax.random.split(key)

    BATCH = 20    # small, not a multiple of 128 -> exercises padded remainder
    D_IN = 32     # stands in for len(X_train[0])

    x = jax.random.normal(k_x, (BATCH, D_IN), dtype=jnp.float32)
    params = init_params(k_p, D_IN)

    out = binary_classification_forward(x, params)
    out = jax.block_until_ready(out)

    ref = reference_forward(x, params)
    assert out.shape == (BATCH, 1)
    assert jnp.allclose(out, ref, atol=2e-3, rtol=2e-3), \
        float(jnp.max(jnp.abs(out - ref)))
    assert bool(jnp.all((out >= 0.0) & (out <= 1.0)))

    print("KERNEL_OK")
</pallas_src>

<mosaic_0001>
module attributes {stable_mosaic.version = 11 : i64} {
  func.func @_mlp_kernel(%arg0: i32, %arg1: memref<128x32xf32, #tpu.memory_space<vmem>>, %arg2: memref<256x32xbf16, #tpu.memory_space<vmem>>, %arg3: memref<256x1xf32, #tpu.memory_space<vmem>>, %arg4: memref<64x256xbf16, #tpu.memory_space<vmem>>, %arg5: memref<64x1xf32, #tpu.memory_space<vmem>>, %arg6: memref<64x1xf32, #tpu.memory_space<vmem>>, %arg7: memref<1xf32, #tpu.memory_space<smem>>, %arg8: memref<1x128xf32, #tpu.memory_space<vmem>>) attributes {dimension_semantics = [#tpu.dimension_semantics<parallel>], iteration_bounds = array<i64: 1>, scalar_prefetch = 0 : i64, scratch_operands = 0 : i64, tpu.core_type = #tpu.core_type<tc>, window_params = [{transform_indices = @transform_0, window_bounds = array<i64: 128, 32>}, {pipeline_mode = #tpu.pipeline_mode<synchronous>, transform_indices = @transform_1, window_bounds = array<i64: 256, 32>}, {pipeline_mode = #tpu.pipeline_mode<synchronous>, transform_indices = @transform_2, window_bounds = array<i64: 256, 1>}, {pipeline_mode = #tpu.pipeline_mode<synchronous>, transform_indices = @transform_3, window_bounds = array<i64: 64, 256>}, {pipeline_mode = #tpu.pipeline_mode<synchronous>, transform_indices = @transform_4, window_bounds = array<i64: 64, 1>}, {pipeline_mode = #tpu.pipeline_mode<synchronous>, transform_indices = @transform_5, window_bounds = array<i64: 64, 1>}, {transform_indices = @transform_6, window_bounds = array<i64: 1>}, {transform_indices = @transform_7, window_bounds = array<i64: 1, 128>}]} {
    %c0 = arith.constant 0 : index
    %c0_0 = arith.constant 0 : index
    %0 = vector.load %arg1[%c0, %c0_0] : memref<128x32xf32, #tpu.memory_space<vmem>>, vector<128x32xf32>
    %1 = arith.truncf %0 : vector<128x32xf32> to vector<128x32xbf16>
    %c0_1 = arith.constant 0 : index
    %c0_2 = arith.constant 0 : index
    %2 = vector.load %arg2[%c0_1, %c0_2] : memref<256x32xbf16, #tpu.memory_space<vmem>>, vector<256x32xbf16>
    %cst = arith.constant dense<0.000000e+00> : vector<256x128xf32>
    %3 = tpu.matmul %2, %1, %cst {dimension_numbers = #tpu.dot_dimension_numbers<[1], [1], [0], [0], [0, 0, 1, 0], [], []>} : vector<256x32xbf16>, vector<128x32xbf16>, vector<256x128xf32> -> vector<256x128xf32>
    %c0_3 = arith.constant 0 : index
    %c0_4 = arith.constant 0 : index
    %4 = vector.load %arg3[%c0_3, %c0_4] : memref<256x1xf32, #tpu.memory_space<vmem>>, vector<256x1xf32>
    %5 = vector.broadcast %4 : vector<256x1xf32> to vector<256x128xf32>
    %6 = arith.addf %3, %5 : vector<256x128xf32>
    %cst_5 = arith.constant 0.000000e+00 : f32
    %7 = vector.broadcast %cst_5 : f32 to vector<256x128xf32>
    %8 = arith.maximumf %6, %7 : vector<256x128xf32>
    %c0_6 = arith.constant 0 : index
    %c0_7 = arith.constant 0 : index
    %9 = vector.load %arg4[%c0_6, %c0_7] : memref<64x256xbf16, #tpu.memory_space<vmem>>, vector<64x256xbf16>
    %10 = arith.truncf %8 : vector<256x128xf32> to vector<256x128xbf16>
    %cst_8 = arith.constant dense<0.000000e+00> : vector<64x128xf32>
    %11 = tpu.matmul %9, %10, %cst_8 {dimension_numbers = #tpu.dot_dimension_numbers<[1], [0], [0], [1], [0, 0, 1, 1], [], []>} : vector<64x256xbf16>, vector<256x128xbf16>, vector<64x128xf32> -> vector<64x128xf32>
    %c0_9 = arith.constant 0 : index
    %c0_10 = arith.constant 0 : index
    %12 = vector.load %arg5[%c0_9, %c0_10] : memref<64x1xf32, #tpu.memory_space<vmem>>, vector<64x1xf32>
    %13 = vector.broadcast %12 : vector<64x1xf32> to vector<64x128xf32>
    %14 = arith.addf %11, %13 : vector<64x128xf32>
    %cst_11 = arith.constant 0.000000e+00 : f32
    %15 = vector.broadcast %cst_11 : f32 to vector<64x128xf32>
    %16 = arith.maximumf %14, %15 : vector<64x128xf32>
    %c0_12 = arith.constant 0 : index
    %c0_13 = arith.constant 0 : index
    %17 = vector.load %arg6[%c0_12, %c0_13] : memref<64x1xf32, #tpu.memory_space<vmem>>, vector<64x1xf32>
    %18 = vector.broadcast %17 : vector<64x1xf32> to vector<64x128xf32>
    %19 = arith.mulf %16, %18 : vector<64x128xf32>
    %cst_14 = arith.constant dense<0.000000e+00> : vector<128xf32>
    %20 = vector.multi_reduction <add>, %19, %cst_14 [0] : vector<64x128xf32> to vector<128xf32>
    %21 = vector.shape_cast %20 : vector<128xf32> to vector<1x128xf32>
    %c0_15 = arith.constant 0 : index
    %22 = memref.load %arg7[%c0_15] : memref<1xf32, #tpu.memory_space<smem>>
    %23 = vector.broadcast %22 : f32 to vector<1x128xf32>
    %24 = arith.addf %21, %23 : vector<1x128xf32>
    %25 = arith.negf %24 : vector<1x128xf32>
    %26 = math.exp %25 : vector<1x128xf32>
    %cst_16 = arith.constant 1.000000e+00 : f32
    %27 = vector.broadcast %cst_16 : f32 to vector<1x128xf32>
    %28 = arith.addf %27, %26 : vector<1x128xf32>
    %29 = arith.divf %27, %28 : vector<1x128xf32>
    %c0_17 = arith.constant 0 : index
    %c0_18 = arith.constant 0 : index
    %30 = vector.load %arg8[%c0_17, %c0_18] : memref<1x128xf32, #tpu.memory_space<vmem>>, vector<1x128xf32>
    tpu.vector_store %arg8[%c0_17, %c0_18], %29 {strides = array<i32>} : memref<1x128xf32, #tpu.memory_space<vmem>>, vector<1x128xf32>,
    return
  }
  func.func @transform_0(%arg0: i32) -> (i32, i32) {
    %c0_i32 = arith.constant 0 : i32
    %c0_i32_0 = arith.constant 0 : i32
    return %arg0, %c0_i32 : i32, i32
  }
  func.func @transform_1(%arg0: i32) -> (i32, i32) {
    %c0_i32 = arith.constant 0 : i32
    %c0_i32_0 = arith.constant 0 : i32
    %c0_i32_1 = arith.constant 0 : i32
    return %c0_i32, %c0_i32_0 : i32, i32
  }
  func.func @transform_2(%arg0: i32) -> (i32, i32) {
    %c0_i32 = arith.constant 0 : i32
    %c0_i32_0 = arith.constant 0 : i32
    %c0_i32_1 = arith.constant 0 : i32
    return %c0_i32, %c0_i32_0 : i32, i32
  }
  func.func @transform_3(%arg0: i32) -> (i32, i32) {
    %c0_i32 = arith.constant 0 : i32
    %c0_i32_0 = arith.constant 0 : i32
    %c0_i32_1 = arith.constant 0 : i32
    return %c0_i32, %c0_i32_0 : i32, i32
  }
  func.func @transform_4(%arg0: i32) -> (i32, i32) {
    %c0_i32 = arith.constant 0 : i32
    %c0_i32_0 = arith.constant 0 : i32
    %c0_i32_1 = arith.constant 0 : i32
    return %c0_i32, %c0_i32_0 : i32, i32
  }
  func.func @transform_5(%arg0: i32) -> (i32, i32) {
    %c0_i32 = arith.constant 0 : i32
    %c0_i32_0 = arith.constant 0 : i32
    %c0_i32_1 = arith.constant 0 : i32
    return %c0_i32, %c0_i32_0 : i32, i32
  }
  func.func @transform_6(%arg0: i32) -> i32 {
    %c0_i32 = arith.constant 0 : i32
    %c0_i32_0 = arith.constant 0 : i32
    return %c0_i32 : i32
  }
  func.func @transform_7(%arg0: i32) -> (i32, i32) {
    %c0_i32 = arith.constant 0 : i32
    %c0_i32_0 = arith.constant 0 : i32
    return %c0_i32, %arg0 : i32, i32
  }
}

</mosaic_0001>

<llo_original>
// kernel: tpu_custom_call.1
$region0: #{tpu_custom_call.1}
  #allocation0 [shape = 'u32[]', space=smem, size = 0x4, offset = 0x4, fixed_abs, tag = 'smem constant byte address 0x4 - core index']
  #allocation1 [shape = 'u32[72,128]{1,0:T(1,128)}', space=vmem, size = 0x9000, scoped, tag = 'internal scratch']
  #allocation2 [shape = 'f32[1]{0:T(128)S(6)}', space=smem, size = 0x200, scoped, tag = 'scoped memory for tpu_custom_call.1']
  %s0 = inlined_call_operand.vmem [shape: f32[128,32], index: 0, kind: input, shape index: {}]
  %s1 = inlined_call_operand.vmem [shape: bf16[256,32], index: 1, kind: input, shape index: {}]
  %s2 = inlined_call_operand.vmem [shape: f32[256,1], index: 2, kind: input, shape index: {}]
  %s3 = inlined_call_operand.vmem [shape: bf16[64,256], index: 3, kind: input, shape index: {}]
  %s4 = inlined_call_operand.vmem [shape: f32[64,1], index: 4, kind: input, shape index: {}]
  %s5 = inlined_call_operand.vmem [shape: f32[64,1], index: 5, kind: input, shape index: {}]
  %s6 = inlined_call_operand.<no memory space> [shape: f32[1], index: 6, kind: input, shape index: {}]
  %s7 = inlined_call_operand.hbm [shape: f32[1,128], index: 7, kind: output, shape index: {}]
  %s8 = sld [smem:[#allocation0]]
  $region38: #{tpu_custom_call.1} parent=0
    _
  %s10 = ssub.s32 1, %s8
  %s11 = scalar_select 0, %s10, %s8
  %12 = sst [smem:[#allocation2]] %s6
  $region1: #{tpu_custom_call.1} parent=0
    #allocation3 [shape = 'u8[512]{0}', space=vmem, size = 0x400, scoped, tag = 'output window, operand 0, single buffered']
    #allocation4 [shape = 's32[1]{0}', space=sflag, size = 0x4, scoped, tag = 'scoped memory for tpu_custom_call.1']
    %13 = vsyncpa [#allocation4], 0
    // Predicated region
    $region2: #{tpu_custom_call.1} parent=1 // pred_check
      _
    $region3: #{tpu_custom_call.1} parent=1 // pred_check_branch
      %15 = sbr.rel (0) target = $region5
    $region4: #{tpu_custom_call.1} parent=1 // pred_region
      _
    $region5: #{tpu_custom_call.1} parent=1 // pred_fallthru
      _
    // Predicated region
    $region6: #{tpu_custom_call.1} parent=1 // pred_check
      _
    $region7: #{tpu_custom_call.1} parent=1 // pred_check_branch
      %17 = sbr.rel (0) target = $region9
    $region8: #{tpu_custom_call.1} parent=1 // pred_region
      _
    $region9: #{tpu_custom_call.1} parent=1 // pred_fallthru
      _
    // Predicated region
    $region10: #{tpu_custom_call.1} parent=1 // pred_check
      _
    $region11: #{tpu_custom_call.1} parent=1 // pred_check_branch
      %19 = sbr.rel (0) target = $region13
    $region12: #{tpu_custom_call.1} parent=1 // pred_region
      _
    $region13: #{tpu_custom_call.1} parent=1 // pred_fallthru
      _
    // Predicated region
    $region14: #{tpu_custom_call.1} parent=1 // pred_check
      _
    $region15: #{tpu_custom_call.1} parent=1 // pred_check_branch
      %21 = sbr.rel (0) target = $region17
    $region16: #{tpu_custom_call.1} parent=1 // pred_region
      _
    $region17: #{tpu_custom_call.1} parent=1 // pred_fallthru
      _
    // Predicated region
    $region18: #{tpu_custom_call.1} parent=1 // pred_check
      _
    $region19: #{tpu_custom_call.1} parent=1 // pred_check_branch
      %23 = sbr.rel (0) target = $region21
    $region20: #{tpu_custom_call.1} parent=1 // pred_region
      _
    $region21: #{tpu_custom_call.1} parent=1 // pred_fallthru
      _
    // Predicated region
    $region22: #{tpu_custom_call.1} parent=1 // pred_check
      _
    $region23: #{tpu_custom_call.1} parent=1 // pred_check_branch
      %25 = sbr.rel (0) target = $region25
    $region24: #{tpu_custom_call.1} parent=1 // pred_region
      _
    $region25: #{tpu_custom_call.1} parent=1 // pred_fallthru
      _
    // Predicated region
    $region26: #{tpu_custom_call.1} parent=1 // pred_check
      _
    $region27: #{tpu_custom_call.1} parent=1 // pred_check_branch
      %27 = sbr.rel (0) target = $region29
    $region28: #{tpu_custom_call.1} parent=1 // pred_region
      _
    $region29: #{tpu_custom_call.1} parent=1 // pred_fallthru
      _
    %v28 = vld [vmem:[%s0] sm:$0xff]
    %v29 = vld [vmem:[%s0 + $0x8] sm:$0xff]
    %v30 = vld [vmem:[%s0 + $0x10] sm:$0xff]
    %v31 = vld [vmem:[%s0 + $0x18] sm:$0xff]
    %v32 = vld [vmem:[%s0 + $0x20] sm:$0xff]
    %v33 = vld [vmem:[%s0 + $0x28] sm:$0xff]
    %v34 = vld [vmem:[%s0 + $0x30] sm:$0xff]
    %v35 = vld [vmem:[%s0 + $0x38] sm:$0xff]
    %v36 = vld [vmem:[%s0 + $0x40] sm:$0xff]
    %v37 = vld [vmem:[%s0 + $0x48] sm:$0xff]
    %v38 = vld [vmem:[%s0 + $0x50] sm:$0xff]
    %v39 = vld [vmem:[%s0 + $0x58] sm:$0xff]
    %v40 = vld [vmem:[%s0 + $0x60] sm:$0xff]
    %v41 = vld [vmem:[%s0 + $0x68] sm:$0xff]
    %v42 = vld [vmem:[%s0 + $0x70] sm:$0xff]
    %v43 = vld [vmem:[%s0 + $0x78] sm:$0xff]
    %v44 = vpack.c.bf16 %v29, %v28
    %v45 = vpack.c.bf16 %v31, %v30
    %v46 = vpack.c.bf16 %v33, %v32
    %v47 = vpack.c.bf16 %v35, %v34
    %v48 = vpack.c.bf16 %v37, %v36
    %v49 = vpack.c.bf16 %v39, %v38
    %v50 = vpack.c.bf16 %v41, %v40
    %v51 = vpack.c.bf16 %v43, %v42
    %v52 = vld [vmem:[%s1] sm:$0xf]
    %v53 = vld [vmem:[%s1 + $0x4] sm:$0xf]
    %v54 = vld [vmem:[%s1 + $0x8] sm:$0xf]
    %v55 = vld [vmem:[%s1 + $0xc] sm:$0xf]
    %v56 = vld [vmem:[%s1 + $0x10] sm:$0xf]
    %v57 = vld [vmem:[%s1 + $0x14] sm:$0xf]
    %v58 = vld [vmem:[%s1 + $0x18] sm:$0xf]
    %v59 = vld [vmem:[%s1 + $0x1c] sm:$0xf]
    %v60 = vld [vmem:[%s1 + $0x20] sm:$0xf]
    %v61 = vld [vmem:[%s1 + $0x24] sm:$0xf]
    %v62 = vld [vmem:[%s1 + $0x28] sm:$0xf]
    %v63 = vld [vmem:[%s1 + $0x2c] sm:$0xf]
    %v64 = vld [vmem:[%s1 + $0x30] sm:$0xf]
    %v65 = vld [vmem:[%s1 + $0x34] sm:$0xf]
    %v66 = vld [vmem:[%s1 + $0x38] sm:$0xf]
    %v67 = vld [vmem:[%s1 + $0x3c] sm:$0xf]
    %v68 = vld [vmem:[%s1 + $0x40] sm:$0xf]
    %v69 = vld [vmem:[%s1 + $0x44] sm:$0xf]
    %v70 = vld [vmem:[%s1 + $0x48] sm:$0xf]
    %v71 = vld [vmem:[%s1 + $0x4c] sm:$0xf]
    %v72 = vld [vmem:[%s1 + $0x50] sm:$0xf]
    %v73 = vld [vmem:[%s1 + $0x54] sm:$0xf]
    %v74 = vld [vmem:[%s1 + $0x58] sm:$0xf]
    %v75 = vld [vmem:[%s1 + $0x5c] sm:$0xf]
    %v76 = vld [vmem:[%s1 + $0x60] sm:$0xf]
    %v77 = vld [vmem:[%s1 + $0x64] sm:$0xf]
    %v78 = vld [vmem:[%s1 + $0x68] sm:$0xf]
    %v79 = vld [vmem:[%s1 + $0x6c] sm:$0xf]
    %v80 = vld [vmem:[%s1 + $0x70] sm:$0xf]
    %v81 = vld [vmem:[%s1 + $0x74] sm:$0xf]
    %v82 = vld [vmem:[%s1 + $0x78] sm:$0xf]
    %v83 = vld [vmem:[%s1 + $0x7c] sm:$0xf]
    %v84 = vld [vmem:[%s2] sm:$0xff]
    %v85 = vld [vmem:[%s2 + $0x8] sm:$0xff]
    %v86 = vld [vmem:[%s2 + $0x10] sm:$0xff]
    %v87 = vld [vmem:[%s2 + $0x18] sm:$0xff]
    %v88 = vld [vmem:[%s2 + $0x20] sm:$0xff]
    %v89 = vld [vmem:[%s2 + $0x28] sm:$0xff]
    %v90 = vld [vmem:[%s2 + $0x30] sm:$0xff]
    %v91 = vld [vmem:[%s2 + $0x38] sm:$0xff]
    %v92 = vld [vmem:[%s2 + $0x40] sm:$0xff]
    %v93 = vld [vmem:[%s2 + $0x48] sm:$0xff]
    %v94 = vld [vmem:[%s2 + $0x50] sm:$0xff]
    %v95 = vld [vmem:[%s2 + $0x58] sm:$0xff]
    %v96 = vld [vmem:[%s2 + $0x60] sm:$0xff]
    %v97 = vld [vmem:[%s2 + $0x68] sm:$0xff]
    %v98 = vld [vmem:[%s2 + $0x70] sm:$0xff]
    %v99 = vld [vmem:[%s2 + $0x78] sm:$0xff]
    %v100 = vld [vmem:[%s2 + $0x80] sm:$0xff]
    %v101 = vld [vmem:[%s2 + $0x88] sm:$0xff]
    %v102 = vld [vmem:[%s2 + $0x90] sm:$0xff]
    %v103 = vld [vmem:[%s2 + $0x98] sm:$0xff]
    %v104 = vld [vmem:[%s2 + $0xa0] sm:$0xff]
    %v105 = vld [vmem:[%s2 + $0xa8] sm:$0xff]
    %v106 = vld [vmem:[%s2 + $0xb0] sm:$0xff]
    %v107 = vld [vmem:[%s2 + $0xb8] sm:$0xff]
    %v108 = vld [vmem:[%s2 + $0xc0] sm:$0xff]
    %v109 = vld [vmem:[%s2 + $0xc8] sm:$0xff]
    %v110 = vld [vmem:[%s2 + $0xd0] sm:$0xff]
    %v111 = vld [vmem:[%s2 + $0xd8] sm:$0xff]
    %v112 = vld [vmem:[%s2 + $0xe0] sm:$0xff]
    %v113 = vld [vmem:[%s2 + $0xe8] sm:$0xff]
    %v114 = vld [vmem:[%s2 + $0xf0] sm:$0xff]
    %v115 = vld [vmem:[%s2 + $0xf8] sm:$0xff]
    %117 = vset.pattern.permute.xlu0 0
    %118 = vperm.xlu0 %117, %v84
    %v119 = vpop.permute.xlu0 %118
    %122 = vset.pattern.permute.xlu0 0
    %123 = vperm.xlu0 %122, %v85
    %v124 = vpop.permute.xlu0 %123
    %127 = vset.pattern.permute.xlu0 0
    %128 = vperm.xlu0 %127, %v86
    %v129 = vpop.permute.xlu0 %128
    %132 = vset.pattern.permute.xlu0 0
    %133 = vperm.xlu0 %132, %v87
    %v134 = vpop.permute.xlu0 %133
    %137 = vset.pattern.permute.xlu0 0
    %138 = vperm.xlu0 %137, %v88
    %v139 = vpop.permute.xlu0 %138
    %142 = vset.pattern.permute.xlu0 0
    %143 = vperm.xlu0 %142, %v89
    %v144 = vpop.permute.xlu0 %143
    %147 = vset.pattern.permute.xlu0 0
    %148 = vperm.xlu0 %147, %v90
    %v149 = vpop.permute.xlu0 %148
    %152 = vset.pattern.permute.xlu0 0
    %153 = vperm.xlu0 %152, %v91
    %v154 = vpop.permute.xlu0 %153
    %157 = vset.pattern.permute.xlu0 0
    %158 = vperm.xlu0 %157, %v92
    %v159 = vpop.permute.xlu0 %158
    %162 = vset.pattern.permute.xlu0 0
    %163 = vperm.xlu0 %162, %v93
    %v164 = vpop.permute.xlu0 %163
    %167 = vset.pattern.permute.xlu0 0
    %168 = vperm.xlu0 %167, %v94
    %v169 = vpop.permute.xlu0 %168
    %172 = vset.pattern.permute.xlu0 0
    %173 = vperm.xlu0 %172, %v95
    %v174 = vpop.permute.xlu0 %173
    %177 = vset.pattern.permute.xlu0 0
    %178 = vperm.xlu0 %177, %v96
    %v179 = vpop.permute.xlu0 %178
    %182 = vset.pattern.permute.xlu0 0
    %183 = vperm.xlu0 %182, %v97
    %v184 = vpop.permute.xlu0 %183
    %187 = vset.pattern.permute.xlu0 0
    %188 = vperm.xlu0 %187, %v98
    %v189 = vpop.permute.xlu0 %188
    %192 = vset.pattern.permute.xlu0 0
    %193 = vperm.xlu0 %192, %v99
    %v194 = vpop.permute.xlu0 %193
    %197 = vset.pattern.permute.xlu0 0
    %198 = vperm.xlu0 %197, %v100
    %v199 = vpop.permute.xlu0 %198
    %202 = vset.pattern.permute.xlu0 0
    %203 = vperm.xlu0 %202, %v101
    %v204 = vpop.permute.xlu0 %203
    %207 = vset.pattern.permute.xlu0 0
    %208 = vperm.xlu0 %207, %v102
    %v209 = vpop.permute.xlu0 %208
    %212 = vset.pattern.permute.xlu0 0
    %213 = vperm.xlu0 %212, %v103
    %v214 = vpop.permute.xlu0 %213
    %217 = vset.pattern.permute.xlu0 0
    %218 = vperm.xlu0 %217, %v104
    %v219 = vpop.permute.xlu0 %218
    %222 = vset.pattern.permute.xlu0 0
    %223 = vperm.xlu0 %222, %v105
    %v224 = vpop.permute.xlu0 %223
    %227 = vset.pattern.permute.xlu0 0
    %228 = vperm.xlu0 %227, %v106
    %v229 = vpop.permute.xlu0 %228
    %232 = vset.pattern.permute.xlu0 0
    %233 = vperm.xlu0 %232, %v107
    %v234 = vpop.permute.xlu0 %233
    %237 = vset.pattern.permute.xlu0 0
    %238 = vperm.xlu0 %237, %v108
    %v239 = vpop.permute.xlu0 %238
    %242 = vset.pattern.permute.xlu0 0
    %243 = vperm.xlu0 %242, %v109
    %v244 = vpop.permute.xlu0 %243
    %247 = vset.pattern.permute.xlu0 0
    %248 = vperm.xlu0 %247, %v110
    %v249 = vpop.permute.xlu0 %248
    %252 = vset.pattern.permute.xlu0 0
    %253 = vperm.xlu0 %252, %v111
    %v254 = vpop.permute.xlu0 %253
    %257 = vset.pattern.permute.xlu0 0
    %258 = vperm.xlu0 %257, %v112
    %v259 = vpop.permute.xlu0 %258
    %262 = vset.pattern.permute.xlu0 0
    %263 = vperm.xlu0 %262, %v113
    %v264 = vpop.permute.xlu0 %263
    %267 = vset.pattern.permute.xlu0 0
    %268 = vperm.xlu0 %267, %v114
    %v269 = vpop.permute.xlu0 %268
    %272 = vset.pattern.permute.xlu0 0
    %273 = vperm.xlu0 %272, %v115
    %v274 = vpop.permute.xlu0 %273
    %v308 = vunpack.c.l.b16 %v52
    %v309 = vunpack.c.l.b16 %v53
    %v310 = vunpack.c.l.b16 %v54
    %v311 = vunpack.c.l.b16 %v55
    %v312 = vunpack.c.l.b16 %v56
    %v313 = vunpack.c.l.b16 %v57
    %v314 = vunpack.c.l.b16 %v58
    %v315 = vunpack.c.l.b16 %v59
    %v316 = vunpack.c.l.b16 %v60
    %v317 = vunpack.c.l.b16 %v61
    %v318 = vunpack.c.l.b16 %v62
    %v319 = vunpack.c.l.b16 %v63
    %v320 = vunpack.c.l.b16 %v64
    %v321 = vunpack.c.l.b16 %v65
    %v322 = vunpack.c.l.b16 %v66
    %v323 = vunpack.c.l.b16 %v67
    %v324 = vunpack.c.l.b16 %v68
    %v325 = vunpack.c.l.b16 %v69
    %v326 = vunpack.c.l.b16 %v70
    %v327 = vunpack.c.l.b16 %v71
    %v328 = vunpack.c.l.b16 %v72
    %v329 = vunpack.c.l.b16 %v73
    %v330 = vunpack.c.l.b16 %v74
    %v331 = vunpack.c.l.b16 %v75
    %v332 = vunpack.c.l.b16 %v76
    %v333 = vunpack.c.l.b16 %v77
    %v334 = vunpack.c.l.b16 %v78
    %v335 = vunpack.c.l.b16 %v79
    %v336 = vunpack.c.l.b16 %v80
    %v337 = vunpack.c.l.b16 %v81
    %v338 = vunpack.c.l.b16 %v82
    %v339 = vunpack.c.l.b16 %v83
    %v340 = vpack.c.b16 %v309, %v308
    %v341 = vpack.c.b16 %v311, %v310
    %v342 = vpack.c.b16 %v313, %v312
    %v343 = vpack.c.b16 %v315, %v314
    %v344 = vpack.c.b16 %v317, %v316
    %v345 = vpack.c.b16 %v319, %v318
    %v346 = vpack.c.b16 %v321, %v320
    %v347 = vpack.c.b16 %v323, %v322
    %v348 = vpack.c.b16 %v325, %v324
    %v349 = vpack.c.b16 %v327, %v326
    %v350 = vpack.c.b16 %v329, %v328
    %v351 = vpack.c.b16 %v331, %v330
    %v352 = vpack.c.b16 %v333, %v332
    %v353 = vpack.c.b16 %v335, %v334
    %v354 = vpack.c.b16 %v337, %v336
    %v355 = vpack.c.b16 %v339, %v338
    %vm356 = vcmask 261120
    %v358 = vsel %vm356, %v340, 0
    %v361 = vsel %vm356, %v341, 0
    %v364 = vsel %vm356, %v342, 0
    %v367 = vsel %vm356, %v343, 0
    %v370 = vsel %vm356, %v344, 0
    %v373 = vsel %vm356, %v345, 0
    %v376 = vsel %vm356, %v346, 0
    %v379 = vsel %vm356, %v347, 0
    %v382 = vsel %vm356, %v348, 0
    %v385 = vsel %vm356, %v349, 0
    %v388 = vsel %vm356, %v350, 0
    %v391 = vsel %vm356, %v351, 0
    %v394 = vsel %vm356, %v352, 0
    %v397 = vsel %vm356, %v353, 0
    %v400 = vsel %vm356, %v354, 0
    %v403 = vsel %vm356, %v355, 0
    %v406 = vsel %vm356, %v44, 0
    %v409 = vsel %vm356, %v45, 0
    %v412 = vsel %vm356, %v46, 0
    %v415 = vsel %vm356, %v47, 0
    %v418 = vsel %vm356, %v48, 0
    %v421 = vsel %vm356, %v49, 0
    %v424 = vsel %vm356, %v50, 0
    %v427 = vsel %vm356, %v51, 0
    %429 = vmatpush.bf16.xpose.msra.mxu0 %v427
    %430 = vmatpush.bf16.xpose.msra.mxu0 %v424
    %431 = vmatpush.bf16.xpose.msra.mxu0 %v421
    %432 = vmatpush.bf16.xpose.msra.mxu0 %v418
    %433 = vmatpush.bf16.xpose.msra.mxu0 %v415
    %434 = vmatpush.bf16.xpose.msra.mxu0 %v412
    %435 = vmatpush.bf16.xpose.msra.mxu0 %v409
    %436 = vmatpush.bf16.xpose.msra.mxu0 %v406
    %437 = vmatmul.bf16.gmra.mxu0 %v358
    %v438 = vpop.f32.mrf.mxu0
    %v439 = vadd.f32 %v119, %v438
    %v440 = vpop.f32.mrf.mxu0
    %v441 = vadd.f32 %v124, %v440
    %442 = vmatmul.bf16.gmra.mxu0 %v361
    %v443 = vpop.f32.mrf.mxu0
    %v444 = vadd.f32 %v129, %v443
    %v445 = vpop.f32.mrf.mxu0
    %v446 = vadd.f32 %v134, %v445
    %447 = vmatmul.bf16.gmra.mxu0 %v364
    %v448 = vpop.f32.mrf.mxu0
    %v449 = vadd.f32 %v139, %v448
    %v450 = vpop.f32.mrf.mxu0
    %v451 = vadd.f32 %v144, %v450
    %452 = vmatmul.bf16.gmra.mxu0 %v367
    %v453 = vpop.f32.mrf.mxu0
    %v454 = vadd.f32 %v149, %v453
    %v455 = vpop.f32.mrf.mxu0
    %v456 = vadd.f32 %v154, %v455
    %457 = vmatmul.bf16.gmra.mxu0 %v370
    %v458 = vpop.f32.mrf.mxu0
    %v459 = vadd.f32 %v159, %v458
    %v460 = vpop.f32.mrf.mxu0
    %v461 = vadd.f32 %v164, %v460
    %462 = vmatmul.bf16.gmra.mxu0 %v373
    %v463 = vpop.f32.mrf.mxu0
    %v464 = vadd.f32 %v169, %v463
    %v465 = vpop.f32.mrf.mxu0
    %v466 = vadd.f32 %v174, %v465
    %467 = vmatmul.bf16.gmra.mxu0 %v376
    %v468 = vpop.f32.mrf.mxu0
    %v469 = vadd.f32 %v179, %v468
    %v470 = vpop.f32.mrf.mxu0
    %v471 = vadd.f32 %v184, %v470
    %472 = vmatmul.bf16.gmra.mxu0 %v379
    %v473 = vpop.f32.mrf.mxu0
    %v474 = vadd.f32 %v189, %v473
    %v475 = vpop.f32.mrf.mxu0
    %v476 = vadd.f32 %v194, %v475
    %477 = vmatmul.bf16.gmra.mxu0 %v382
    %v478 = vpop.f32.mrf.mxu0
    %v479 = vadd.f32 %v199, %v478
    %v480 = vpop.f32.mrf.mxu0
    %v481 = vadd.f32 %v204, %v480
    %482 = vmatmul.bf16.gmra.mxu0 %v385
    %v483 = vpop.f32.mrf.mxu0
    %v484 = vadd.f32 %v209, %v483
    %v485 = vpop.f32.mrf.mxu0
    %v486 = vadd.f32 %v214, %v485
    %487 = vmatmul.bf16.gmra.mxu0 %v388
    %v488 = vpop.f32.mrf.mxu0
    %v489 = vadd.f32 %v219, %v488
    %v490 = vpop.f32.mrf.mxu0
    %v491 = vadd.f32 %v224, %v490
    %492 = vmatmul.bf16.gmra.mxu0 %v391
    %v493 = vpop.f32.mrf.mxu0
    %v494 = vadd.f32 %v229, %v493
    %v495 = vpop.f32.mrf.mxu0
    %v496 = vadd.f32 %v234, %v495
    %497 = vmatmul.bf16.gmra.mxu0 %v394
    %v498 = vpop.f32.mrf.mxu0
    %v499 = vadd.f32 %v239, %v498
    %v500 = vpop.f32.mrf.mxu0
    %v501 = vadd.f32 %v244, %v500
    %502 = vmatmul.bf16.gmra.mxu0 %v397
    %v503 = vpop.f32.mrf.mxu0
    %v504 = vadd.f32 %v249, %v503
    %v505 = vpop.f32.mrf.mxu0
    %v506 = vadd.f32 %v254, %v505
    %507 = vmatmul.bf16.gmra.mxu0 %v400
    %v508 = vpop.f32.mrf.mxu0
    %v509 = vadd.f32 %v259, %v508
    %v510 = vpop.f32.mrf.mxu0
    %v511 = vadd.f32 %v264, %v510
    %512 = vmatmul.bf16.gmra.mxu0 %v403
    %v513 = vpop.f32.mrf.mxu0
    %v514 = vadd.f32 %v269, %v513
    %v515 = vpop.f32.mrf.mxu0
    %v516 = vadd.f32 %v274, %v515
    %517 = vdwg.mxu0
    %v518 = vmax.f32 %v439, 0.0
    %v519 = vmax.f32 %v441, 0.0
    %v520 = vmax.f32 %v444, 0.0
    %v521 = vmax.f32 %v446, 0.0
    %v522 = vmax.f32 %v449, 0.0
    %v523 = vmax.f32 %v451, 0.0
    %v524 = vmax.f32 %v454, 0.0
    %v525 = vmax.f32 %v456, 0.0
    %v526 = vmax.f32 %v459, 0.0
    %v527 = vmax.f32 %v461, 0.0
    %v528 = vmax.f32 %v464, 0.0
    %v529 = vmax.f32 %v466, 0.0
    %v530 = vmax.f32 %v469, 0.0
    %v531 = vmax.f32 %v471, 0.0
    %v532 = vmax.f32 %v474, 0.0
    %v533 = vmax.f32 %v476, 0.0
    %v534 = vmax.f32 %v479, 0.0
    %v535 = vmax.f32 %v481, 0.0
    %v536 = vmax.f32 %v484, 0.0
    %v537 = vmax.f32 %v486, 0.0
    %v538 = vmax.f32 %v489, 0.0
    %v539 = vmax.f32 %v491, 0.0
    %v540 = vmax.f32 %v494, 0.0
    %v541 = vmax.f32 %v496, 0.0
    %v542 = vmax.f32 %v499, 0.0
    %v543 = vmax.f32 %v501, 0.0
    %v544 = vmax.f32 %v504, 0.0
    %v545 = vmax.f32 %v506, 0.0
    %v546 = vmax.f32 %v509, 0.0
    %v547 = vmax.f32 %v511, 0.0
    %v548 = vmax.f32 %v514, 0.0
    %v549 = vmax.f32 %v516, 0.0
    %v550 = vld [vmem:[%s3] sm:$0xff]
    %v551 = vld [vmem:[%s3 + $0x8] sm:$0xff]
    %v552 = vld [vmem:[%s3 + $0x10] sm:$0xff]
    %v553 = vld [vmem:[%s3 + $0x18] sm:$0xff]
    %v554 = vld [vmem:[%s3 + $0x20] sm:$0xff]
    %v555 = vld [vmem:[%s3 + $0x28] sm:$0xff]
    %v556 = vld [vmem:[%s3 + $0x30] sm:$0xff]
    %v557 = vld [vmem:[%s3 + $0x38] sm:$0xff]
    %v558 = vpack.c.bf16 %v519, %v518
    %v559 = vpack.c.bf16 %v521, %v520
    %v560 = vpack.c.bf16 %v523, %v522
    %v561 = vpack.c.bf16 %v525, %v524
    %v562 = vpack.c.bf16 %v527, %v526
    %v563 = vpack.c.bf16 %v529, %v528
    %v564 = vpack.c.bf16 %v531, %v530
    %v565 = vpack.c.bf16 %v533, %v532
    %v566 = vpack.c.bf16 %v535, %v534
    %v567 = vpack.c.bf16 %v537, %v536
    %v568 = vpack.c.bf16 %v539, %v538
    %v569 = vpack.c.bf16 %v541, %v540
    %v570 = vpack.c.bf16 %v543, %v542
    %v571 = vpack.c.bf16 %v545, %v544
    %v572 = vpack.c.bf16 %v547, %v546
    %v573 = vpack.c.bf16 %v549, %v548
    %v574 = vld [vmem:[%s4] sm:$0xff]
    %v575 = vld [vmem:[%s4 + $0x8] sm:$0xff]
    %v576 = vld [vmem:[%s4 + $0x10] sm:$0xff]
    %v577 = vld [vmem:[%s4 + $0x18] sm:$0xff]
    %v578 = vld [vmem:[%s4 + $0x20] sm:$0xff]
    %v579 = vld [vmem:[%s4 + $0x28] sm:$0xff]
    %v580 = vld [vmem:[%s4 + $0x30] sm:$0xff]
    %v581 = vld [vmem:[%s4 + $0x38] sm:$0xff]
    %583 = vset.pattern.permute.xlu0 0
    %584 = vperm.xlu0 %583, %v574
    %v585 = vpop.permute.xlu0 %584
    %588 = vset.pattern.permute.xlu0 0
    %589 = vperm.xlu0 %588, %v575
    %v590 = vpop.permute.xlu0 %589
    %593 = vset.pattern.permute.xlu0 0
    %594 = vperm.xlu0 %593, %v576
    %v595 = vpop.permute.xlu0 %594
    %598 = vset.pattern.permute.xlu0 0
    %599 = vperm.xlu0 %598, %v577
    %v600 = vpop.permute.xlu0 %599
    %603 = vset.pattern.permute.xlu0 0
    %604 = vperm.xlu0 %603, %v578
    %v605 = vpop.permute.xlu0 %604
    %608 = vset.pattern.permute.xlu0 0
    %609 = vperm.xlu0 %608, %v579
    %v610 = vpop.permute.xlu0 %609
    %613 = vset.pattern.permute.xlu0 0
    %614 = vperm.xlu0 %613, %v580
    %v615 = vpop.permute.xlu0 %614
    %618 = vset.pattern.permute.xlu0 0
    %619 = vperm.xlu0 %618, %v581
    %v620 = vpop.permute.xlu0 %619
    %v630 = vunpack.c.l.b16 %v550
    %v631 = vunpack.c.h.b16 %v550
    %v632 = vunpack.c.l.b16 %v551
    %v633 = vunpack.c.h.b16 %v551
    %v634 = vunpack.c.l.b16 %v552
    %v635 = vunpack.c.h.b16 %v552
    %v636 = vunpack.c.l.b16 %v553
    %v637 = vunpack.c.h.b16 %v553
    %v638 = vunpack.c.l.b16 %v554
    %v639 = vunpack.c.h.b16 %v554
    %v640 = vunpack.c.l.b16 %v555
    %v641 = vunpack.c.h.b16 %v555
    %v642 = vunpack.c.l.b16 %v556
    %v643 = vunpack.c.h.b16 %v556
    %v644 = vunpack.c.l.b16 %v557
    %v645 = vunpack.c.h.b16 %v557
    %v646 = vpack.c.b16 %v632, %v630
    %v647 = vpack.c.b16 %v633, %v631
    %v648 = vpack.c.b16 %v636, %v634
    %v649 = vpack.c.b16 %v637, %v635
    %v650 = vpack.c.b16 %v640, %v638
    %v651 = vpack.c.b16 %v641, %v639
    %v652 = vpack.c.b16 %v644, %v642
    %v653 = vpack.c.b16 %v645, %v643
    %662 = vmatpush.bf16.msra.mxu0 %v565
    %663 = vmatpush.bf16.msra.mxu0 %v564
    %664 = vmatpush.bf16.msra.mxu0 %v563
    %665 = vmatpush.bf16.msra.mxu0 %v562
    %666 = vmatpush.bf16.msra.mxu0 %v561
    %667 = vmatpush.bf16.msra.mxu0 %v560
    %668 = vmatpush.bf16.msra.mxu0 %v559
    %669 = vmatpush.bf16.msra.mxu0 %v558
    %670 = vmatmul.bf16.gmra.mxu0 %v646
    %v671 = vpop.f32.mrf.mxu0
    %v672 = vadd.f32 %v585, %v671
    %v673 = vpop.f32.mrf.mxu0
    %v674 = vadd.f32 %v590, %v673
    %675 = vmatmul.bf16.gmra.mxu0 %v648
    %v676 = vpop.f32.mrf.mxu0
    %v677 = vadd.f32 %v595, %v676
    %v678 = vpop.f32.mrf.mxu0
    %v679 = vadd.f32 %v600, %v678
    %680 = vmatmul.bf16.gmra.mxu0 %v650
    %v681 = vpop.f32.mrf.mxu0
    %v682 = vadd.f32 %v605, %v681
    %v683 = vpop.f32.mrf.mxu0
    %v684 = vadd.f32 %v610, %v683
    %685 = vmatmul.bf16.gmra.mxu0 %v652
    %v686 = vpop.f32.mrf.mxu0
    %v687 = vadd.f32 %v615, %v686
    %v688 = vpop.f32.mrf.mxu0
    %v689 = vadd.f32 %v620, %v688
    %690 = vdwg.mxu0
    %691 = vmatpush.bf16.msra.mxu0 %v573
    %692 = vmatpush.bf16.msra.mxu0 %v572
    %693 = vmatpush.bf16.msra.mxu0 %v571
    %694 = vmatpush.bf16.msra.mxu0 %v570
    %695 = vmatpush.bf16.msra.mxu0 %v569
    %696 = vmatpush.bf16.msra.mxu0 %v568
    %697 = vmatpush.bf16.msra.mxu0 %v567
    %698 = vmatpush.bf16.msra.mxu0 %v566
    %699 = vmatmul.bf16.gmra.mxu0 %v647
    %v700 = vpop.f32.mrf.mxu0
    %v701 = vadd.f32 %v672, %v700
    %v702 = vpop.f32.mrf.mxu0
    %v703 = vadd.f32 %v674, %v702
    %704 = vmatmul.bf16.gmra.mxu0 %v649
    %v705 = vpop.f32.mrf.mxu0
    %v706 = vadd.f32 %v677, %v705
    %v707 = vpop.f32.mrf.mxu0
    %v708 = vadd.f32 %v679, %v707
    %709 = vmatmul.bf16.gmra.mxu0 %v651
    %v710 = vpop.f32.mrf.mxu0
    %v711 = vadd.f32 %v682, %v710
    %v712 = vpop.f32.mrf.mxu0
    %v713 = vadd.f32 %v684, %v712
    %714 = vmatmul.bf16.gmra.mxu0 %v653
    %v715 = vpop.f32.mrf.mxu0
    %v716 = vadd.f32 %v687, %v715
    %v717 = vpop.f32.mrf.mxu0
    %v718 = vadd.f32 %v689, %v717
    %719 = vdwg.mxu0
    %v720 = vmax.f32 %v701, 0.0
    %v721 = vmax.f32 %v703, 0.0
    %v722 = vmax.f32 %v706, 0.0
    %v723 = vmax.f32 %v708, 0.0
    %v724 = vmax.f32 %v711, 0.0
    %v725 = vmax.f32 %v713, 0.0
    %v726 = vmax.f32 %v716, 0.0
    %v727 = vmax.f32 %v718, 0.0
    %v728 = vld [vmem:[%s5] sm:$0xff]
    %v729 = vld [vmem:[%s5 + $0x8] sm:$0xff]
    %v730 = vld [vmem:[%s5 + $0x10] sm:$0xff]
    %v731 = vld [vmem:[%s5 + $0x18] sm:$0xff]
    %v732 = vld [vmem:[%s5 + $0x20] sm:$0xff]
    %v733 = vld [vmem:[%s5 + $0x28] sm:$0xff]
    %v734 = vld [vmem:[%s5 + $0x30] sm:$0xff]
    %v735 = vld [vmem:[%s5 + $0x38] sm:$0xff]
    %737 = vset.pattern.permute.xlu0 0
    %738 = vperm.xlu0 %737, %v728
    %v739 = vpop.permute.xlu0 %738
    %742 = vset.pattern.permute.xlu0 0
    %743 = vperm.xlu0 %742, %v729
    %v744 = vpop.permute.xlu0 %743
    %747 = vset.pattern.permute.xlu0 0
    %748 = vperm.xlu0 %747, %v730
    %v749 = vpop.permute.xlu0 %748
    %752 = vset.pattern.permute.xlu0 0
    %753 = vperm.xlu0 %752, %v731
    %v754 = vpop.permute.xlu0 %753
    %757 = vset.pattern.permute.xlu0 0
    %758 = vperm.xlu0 %757, %v732
    %v759 = vpop.permute.xlu0 %758
    %762 = vset.pattern.permute.xlu0 0
    %763 = vperm.xlu0 %762, %v733
    %v764 = vpop.permute.xlu0 %763
    %767 = vset.pattern.permute.xlu0 0
    %768 = vperm.xlu0 %767, %v734
    %v769 = vpop.permute.xlu0 %768
    %772 = vset.pattern.permute.xlu0 0
    %773 = vperm.xlu0 %772, %v735
    %v774 = vpop.permute.xlu0 %773
    %v776 = vmul.f32 %v720, %v739
    %v777 = vmul.f32 %v721, %v744
    %v778 = vmul.f32 %v722, %v749
    %v779 = vmul.f32 %v723, %v754
    %v780 = vmul.f32 %v724, %v759
    %v781 = vmul.f32 %v725, %v764
    %v782 = vmul.f32 %v726, %v769
    %v783 = vmul.f32 %v727, %v774
    %v784 = vadd.f32 %v776, %v777
    %v785 = vadd.f32 %v784, %v778
    %v786 = vadd.f32 %v785, %v779
    %v787 = vadd.f32 %v786, %v780
    %v788 = vadd.f32 %v787, %v781
    %v789 = vadd.f32 %v788, %v782
    %v790 = vadd.f32 %v789, %v783
    %v791 = vrot.slane %v790, 4
    %v792 = vadd.f32 %v790, %v791
    %v793 = vrot.slane %v792, 2
    %v794 = vadd.f32 %v792, %v793
    %v795 = vrot.slane %v794, 1
    %v796 = vadd.f32 %v794, %v795
    %s797 = sld [smem:[#allocation2]]
    %v798 = vstv %s797
    %v799 = vadd.f32 %v796, %v798
    %v800 = vxor.u32 %v799, 2147483648
    %v801 = vmul.f32 %v800, 1.442695
    %v802 = vpow.pop %v801
    %v803 = vadd.f32 %v802, 1.0
    %v804 = vrcp.pop %v803
    %v805 = vmul.f32 %v803, %v804
    %v806 = vsub.f32 1.0, %v805
    %v807 = vmul.f32 %v804, %v806
    %v808 = vadd.f32 %v804, %v807
    %vm809 = vweird.f32 %v803
    %vm810 = vweird.f32 %v804
    %vm811 = vmor %vm809, %vm810
    %v812 = vsel %vm811, %v804, %v808
    %v813 = vand.u32 2147483647, %v803
    %vm814 = vcmp.eq.f32.partialorder %v813, 8.507059e+37
    %v815 = vand.u32 %v803, 2147483648
    %v816 = vor.u32 1.1754944e-38, %v815
    %v817 = vsel %vm814, %v816, %v812
    %v818 = vmul.f32 1.0, %v817
    %819 = vst [vmem:[#allocation3] sm:$0x1] %v818
    // Predicated region
    $region30: #{tpu_custom_call.1} parent=1 // pred_check
      _
    $region31: #{tpu_custom_call.1} parent=1 // pred_check_branch
      %821 = sbr.rel (0) target = $region33
    $region32: #{tpu_custom_call.1} parent=1 // pred_region
      %823 = vsyncadd [#allocation4], 0
      %s825 = sshll.u32 [#allocation3], 4
      %s826 = int_to_ptr.vmem [resolvable:$true] %s825
      %s827 = sshll.u32 %s7, 4
      %s828 = int_to_ptr.hbm [resolvable:$true] %s827
      %830 = dma.vmem_to_hbm [thread:$0]  %s826, 16, %s828, [#allocation4]
    $region33: #{tpu_custom_call.1} parent=1 // pred_fallthru
      _
    // Predicated region
    $region34: #{tpu_custom_call.1} parent=1 // pred_check
      _
    $region35: #{tpu_custom_call.1} parent=1 // pred_check_branch
      %832 = sbr.rel (0) target = $region37
    $region36: #{tpu_custom_call.1} parent=1 // pred_region
      %834 = dma.done [#allocation4], 16
    $region37: #{tpu_custom_call.1} parent=1 // pred_fallthru
      _
    %835 = vsyncpa [#allocation4], 1

</llo_original>
